<compile_context>
chip_gen: v7x
topology: tpu7x:2x2x1
jax: 0.10.0
libtpu: 0.0.40
codegen_flags: <defaults>
</compile_context>

<pallas_src>
import jax
import jax.numpy as jnp
from jax import lax
from jax.experimental import pallas as pl
from jax.experimental.pallas import tpu as pltpu

# ----------------------------- configuration ---------------------------------
N, C_IN, C_OUT = 2, 4, 8
H = W = 16
KS = 3                                  # both kernels are 3x3 (module defaults)
SMALL_DIL, LARGE_DIL = 1, 9             # module defaults
SMALL_PAD, LARGE_PAD = SMALL_DIL, LARGE_DIL   # "same"-style so the sum is legal
HP = H + 2 * LARGE_PAD
WP = W + 2 * LARGE_PAD
# Offset of the small conv's window origin inside the single large-padded buffer.
SMALL_BASE = LARGE_PAD - SMALL_PAD      # = 8
KTAPS = KS * KS * C_IN                  # 36 rows per conv
KTOT = 2 * KTAPS                        # 72 = fused contraction dim
M = H * W                               # 256 = lane-dense matmul M dim
# ------------------------------------------------------------------------------


def multiscale_matmul_kernel(xcol_ref, w_ref, b_ref, o_ref):
    """Single grid step; whole batch resident.

    xcol_ref: (N, KTOT, M)  bf16 im2col'd activations (both convs' taps on K)
    w_ref   : (C_OUT, KTOT) bf16 fused [small | large] weights
    b_ref   : (C_OUT, 1)    f32 small-conv bias
    o_ref   : (N, C_OUT, M) f32 lane-dense output (reshapes to NCHW for free)
    """
    w = w_ref[...]                                   # (C_OUT, KTOT)
    b = b_ref[...].astype(jnp.float32)               # (C_OUT, 1) lane-broadcast
    for n in range(N):                               # static 2-iteration unroll
        acc = jnp.dot(w, xcol_ref[n],
                      preferred_element_type=jnp.float32)   # (C_OUT, M) f32
        o_ref[n] = (acc + b).astype(o_ref.dtype)            # dense (8, 256) vst


def _im2col(x_pad, dil, base):
    """x_pad: (N, C_IN, HP, WP) -> (N, C_IN*KS*KS, H*W) patches for one dilation.

    Row ordering is c*KS*KS + kh*KS + kw, matching an OIHW weight reshaped to
    (C_OUT, C_IN*KS*KS).
    """
    taps = []
    for kh in range(KS):
        for kw in range(KS):
            r0 = base + kh * dil
            c0 = base + kw * dil
            taps.append(x_pad[:, :, r0:r0 + H, c0:c0 + W])     # (N, C_IN, H, W)
    p = jnp.stack(taps, axis=2)                                # (N, C_IN, KS*KS, H, W)
    return p.reshape(N, KTAPS, M)


@jax.jit
def multiscale_conv2d(x_nchw, w_small, w_large, bias):
    """x_nchw: (N, C_IN, H, W) (PyTorch NCHW). Returns (N, C_OUT, H, W) (NCHW)."""
    # --- wrapper-side layout plumbing (no FLOPs): pad once, im2col, fuse weights.
    x_pad = jnp.pad(x_nchw, ((0, 0), (0, 0),
                             (LARGE_PAD, LARGE_PAD), (LARGE_PAD, LARGE_PAD)))
    x_col = jnp.concatenate(
        [_im2col(x_pad, SMALL_DIL, SMALL_BASE),                # small conv taps
         _im2col(x_pad, LARGE_DIL, 0)],                        # large conv taps
        axis=1).astype(jnp.bfloat16)                           # (N, KTOT, M) bf16
    w_fused = jnp.concatenate(
        [w_small.reshape(C_OUT, KTAPS),                        # OIHW -> (C_OUT, 36)
         w_large.reshape(C_OUT, KTAPS)],
        axis=1).astype(jnp.bfloat16)                           # (C_OUT, KTOT) bf16
    b2d = bias.reshape(C_OUT, 1).astype(jnp.float32)

    flops = 2 * N * C_OUT * KTOT * M
    bytes_accessed = (N * KTOT * M * 2            # bf16 x_col
                      + C_OUT * KTOT * 2          # bf16 weights
                      + C_OUT * 4                 # f32 bias
                      + N * C_OUT * M * 4)        # f32 output

    out = pl.pallas_call(
        multiscale_matmul_kernel,
        out_shape=jax.ShapeDtypeStruct((N, C_OUT, M), x_nchw.dtype),
        grid_spec=pltpu.PrefetchScalarGridSpec(
            num_scalar_prefetch=0,
            grid=(1,),                                         # single step
            in_specs=[
                pl.BlockSpec((N, KTOT, M), lambda i: (0, 0, 0)),
                pl.BlockSpec((C_OUT, KTOT), lambda i: (0, 0)),
                pl.BlockSpec((C_OUT, 1), lambda i: (0, 0)),
            ],
            out_specs=pl.BlockSpec((N, C_OUT, M), lambda i: (0, 0, 0)),
        ),
        compiler_params=pltpu.CompilerParams(
            dimension_semantics=("arbitrary",)),
        cost_estimate=pl.CostEstimate(flops=flops, transcendentals=0,
                                      bytes_accessed=bytes_accessed),
    )(x_col, w_fused, b2d)

    return out.reshape(N, C_OUT, H, W)                         # free (contiguous) reshape


def reference(x_nchw, w_small, w_large, bias):
    """Pure-JAX reference matching torch.nn.Conv2d semantics (NCHW, OIHW)."""
    dn = lax.conv_dimension_numbers(x_nchw.shape, w_small.shape,
                                    ("NCHW", "OIHW", "NCHW"))
    small = lax.conv_general_dilated(
        x_nchw, w_small, window_strides=(1, 1),
        padding=[(SMALL_PAD, SMALL_PAD), (SMALL_PAD, SMALL_PAD)],
        rhs_dilation=(SMALL_DIL, SMALL_DIL), dimension_numbers=dn)
    large = lax.conv_general_dilated(
        x_nchw, w_large, window_strides=(1, 1),
        padding=[(LARGE_PAD, LARGE_PAD), (LARGE_PAD, LARGE_PAD)],
        rhs_dilation=(LARGE_DIL, LARGE_DIL), dimension_numbers=dn)
    return small + bias.reshape(1, -1, 1, 1) + large


if __name__ == "__main__":
    key = jax.random.PRNGKey(0)
    kx, kws, kwl, kb = jax.random.split(key, 4)

    # deterministic synthetic parameters (PyTorch-like fan-in scaling)
    fan_in = C_IN * KS * KS
    scale = 1.0 / (fan_in ** 0.5)
    x = jax.random.normal(kx, (N, C_IN, H, W), dtype=jnp.float32)          # NCHW input
    w_small = jax.random.uniform(kws, (C_OUT, C_IN, KS, KS), jnp.float32,
                                 minval=-scale, maxval=scale)              # OIHW
    w_large = jax.random.uniform(kwl, (C_OUT, C_IN, KS, KS), jnp.float32,
                                 minval=-scale, maxval=scale)              # OIHW
    bias = jax.random.uniform(kb, (C_OUT,), jnp.float32,
                              minval=-scale, maxval=scale)

    out = multiscale_conv2d(x, w_small, w_large, bias)
    out = jax.block_until_ready(out)

    ref = reference(x, w_small, w_large, bias)
    assert out.shape == (N, C_OUT, H, W), out.shape
    # bf16 matmul inputs (f32 accumulation) vs the f32 XLA conv reference:
    # observed diffs are ~1e-3, so the tolerance is widened from the old 1e-4.
    assert jnp.allclose(out, ref, atol=2e-2, rtol=2e-2), \
        float(jnp.max(jnp.abs(out - ref)))

    print("KERNEL_OK")
</pallas_src>

<mosaic_0001>
module attributes {stable_mosaic.version = 11 : i64} {
  func.func @multiscale_matmul_kernel(%arg0: i32, %arg1: memref<2x72x256xbf16, #tpu.memory_space<vmem>>, %arg2: memref<8x72xbf16, #tpu.memory_space<vmem>>, %arg3: memref<8x1xf32, #tpu.memory_space<vmem>>, %arg4: memref<2x8x256xf32, #tpu.memory_space<vmem>>) attributes {dimension_semantics = [#tpu.dimension_semantics<arbitrary>], iteration_bounds = array<i64: 1>, scalar_prefetch = 0 : i64, scratch_operands = 0 : i64, tpu.core_type = #tpu.core_type<tc>, window_params = [{pipeline_mode = #tpu.pipeline_mode<synchronous>, transform_indices = @transform_0, window_bounds = array<i64: 2, 72, 256>}, {pipeline_mode = #tpu.pipeline_mode<synchronous>, transform_indices = @transform_1, window_bounds = array<i64: 8, 72>}, {pipeline_mode = #tpu.pipeline_mode<synchronous>, transform_indices = @transform_2, window_bounds = array<i64: 8, 1>}, {pipeline_mode = #tpu.pipeline_mode<synchronous>, transform_indices = @transform_3, window_bounds = array<i64: 2, 8, 256>}]} {
    %c0 = arith.constant 0 : index
    %c0_0 = arith.constant 0 : index
    %0 = vector.load %arg2[%c0, %c0_0] : memref<8x72xbf16, #tpu.memory_space<vmem>>, vector<8x72xbf16>
    %c0_1 = arith.constant 0 : index
    %c0_2 = arith.constant 0 : index
    %1 = vector.load %arg3[%c0_1, %c0_2] : memref<8x1xf32, #tpu.memory_space<vmem>>, vector<8x1xf32>
    %c0_3 = arith.constant 0 : index
    %c0_4 = arith.constant 0 : index
    %c0_5 = arith.constant 0 : index
    %2 = vector.load %arg1[%c0_3, %c0_4, %c0_5] : memref<2x72x256xbf16, #tpu.memory_space<vmem>>, vector<1x72x256xbf16>
    %3 = vector.shape_cast %2 : vector<1x72x256xbf16> to vector<72x256xbf16>
    %cst = arith.constant dense<0.000000e+00> : vector<8x256xf32>
    %4 = tpu.matmul %0, %3, %cst {dimension_numbers = #tpu.dot_dimension_numbers<[1], [0], [0], [1], [0, 0, 1, 1], [], []>} : vector<8x72xbf16>, vector<72x256xbf16>, vector<8x256xf32> -> vector<8x256xf32>
    %5 = vector.broadcast %1 : vector<8x1xf32> to vector<8x256xf32>
    %6 = arith.addf %4, %5 : vector<8x256xf32>
    %c0_6 = arith.constant 0 : index
    %c0_7 = arith.constant 0 : index
    %c0_8 = arith.constant 0 : index
    %7 = vector.load %arg4[%c0_6, %c0_7, %c0_8] : memref<2x8x256xf32, #tpu.memory_space<vmem>>, vector<1x8x256xf32>
    %8 = vector.shape_cast %7 : vector<1x8x256xf32> to vector<8x256xf32>
    %9 = vector.shape_cast %6 : vector<8x256xf32> to vector<1x8x256xf32>
    tpu.vector_store %arg4[%c0_6, %c0_7, %c0_8], %9 {strides = array<i32>} : memref<2x8x256xf32, #tpu.memory_space<vmem>>, vector<1x8x256xf32>,
    %c1 = arith.constant 1 : index
    %c0_9 = arith.constant 0 : index
    %c0_10 = arith.constant 0 : index
    %10 = vector.load %arg1[%c1, %c0_9, %c0_10] : memref<2x72x256xbf16, #tpu.memory_space<vmem>>, vector<1x72x256xbf16>
    %11 = vector.shape_cast %10 : vector<1x72x256xbf16> to vector<72x256xbf16>
    %cst_11 = arith.constant dense<0.000000e+00> : vector<8x256xf32>
    %12 = tpu.matmul %0, %11, %cst_11 {dimension_numbers = #tpu.dot_dimension_numbers<[1], [0], [0], [1], [0, 0, 1, 1], [], []>} : vector<8x72xbf16>, vector<72x256xbf16>, vector<8x256xf32> -> vector<8x256xf32>
    %13 = vector.broadcast %1 : vector<8x1xf32> to vector<8x256xf32>
    %14 = arith.addf %12, %13 : vector<8x256xf32>
    %c1_12 = arith.constant 1 : index
    %c0_13 = arith.constant 0 : index
    %c0_14 = arith.constant 0 : index
    %15 = vector.load %arg4[%c1_12, %c0_13, %c0_14] : memref<2x8x256xf32, #tpu.memory_space<vmem>>, vector<1x8x256xf32>
    %16 = vector.shape_cast %15 : vector<1x8x256xf32> to vector<8x256xf32>
    %17 = vector.shape_cast %14 : vector<8x256xf32> to vector<1x8x256xf32>
    tpu.vector_store %arg4[%c1_12, %c0_13, %c0_14], %17 {strides = array<i32>} : memref<2x8x256xf32, #tpu.memory_space<vmem>>, vector<1x8x256xf32>,
    return
  }
  func.func @transform_0(%arg0: i32) -> (i32, i32, i32) {
    %c0_i32 = arith.constant 0 : i32
    %c0_i32_0 = arith.constant 0 : i32
    %c0_i32_1 = arith.constant 0 : i32
    %c0_i32_2 = arith.constant 0 : i32
    return %c0_i32, %c0_i32_0, %c0_i32_1 : i32, i32, i32
  }
  func.func @transform_1(%arg0: i32) -> (i32, i32) {
    %c0_i32 = arith.constant 0 : i32
    %c0_i32_0 = arith.constant 0 : i32
    %c0_i32_1 = arith.constant 0 : i32
    return %c0_i32, %c0_i32_0 : i32, i32
  }
  func.func @transform_2(%arg0: i32) -> (i32, i32) {
    %c0_i32 = arith.constant 0 : i32
    %c0_i32_0 = arith.constant 0 : i32
    %c0_i32_1 = arith.constant 0 : i32
    return %c0_i32, %c0_i32_0 : i32, i32
  }
  func.func @transform_3(%arg0: i32) -> (i32, i32, i32) {
    %c0_i32 = arith.constant 0 : i32
    %c0_i32_0 = arith.constant 0 : i32
    %c0_i32_1 = arith.constant 0 : i32
    %c0_i32_2 = arith.constant 0 : i32
    return %c0_i32, %c0_i32_0, %c0_i32_1 : i32, i32, i32
  }
}

</mosaic_0001>

<llo_original>
// kernel: multiscale_conv2d.1
$region0: #{multiscale_conv2d.1}
  #allocation0 [shape = 'u32[]', space=smem, size = 0x4, offset = 0x4, fixed_abs, tag = 'smem constant byte address 0x4 - core index']
  #allocation1 [shape = 'u32[144,128]{1,0:T(1,128)}', space=vmem, size = 0x12000, scoped, tag = 'internal scratch']
  %s0 = inlined_call_operand.vmem [shape: bf16[2,72,256], index: 0, kind: input, shape index: {}]
  %s1 = inlined_call_operand.vmem [shape: bf16[8,72], index: 1, kind: input, shape index: {}]
  %s2 = inlined_call_operand.vmem [shape: f32[8,1], index: 2, kind: input, shape index: {}]
  %s3 = inlined_call_operand.vmem [shape: f32[2,8,256], index: 3, kind: output, shape index: {}]
  %s4 = sld [smem:[#allocation0]]
  $region22: #{multiscale_conv2d.1} parent=0
    _
  %s6 = ssub.s32 1, %s4
  %s7 = scalar_select 0, %s6, %s4
  // Predicated region
  $region2: #{multiscale_conv2d.1} parent=0 // pred_check
    _
  $region3: #{multiscale_conv2d.1} parent=0 // pred_check_branch
    %9 = sbr.rel (0) target = $region5
  $region4: #{multiscale_conv2d.1} parent=0 // pred_region
    _
  $region5: #{multiscale_conv2d.1} parent=0 // pred_fallthru
    _
  // Predicated region
  $region6: #{multiscale_conv2d.1} parent=0 // pred_check
    _
  $region7: #{multiscale_conv2d.1} parent=0 // pred_check_branch
    %11 = sbr.rel (0) target = $region9
  $region8: #{multiscale_conv2d.1} parent=0 // pred_region
    _
  $region9: #{multiscale_conv2d.1} parent=0 // pred_fallthru
    _
  // Predicated region
  $region10: #{multiscale_conv2d.1} parent=0 // pred_check
    _
  $region11: #{multiscale_conv2d.1} parent=0 // pred_check_branch
    %13 = sbr.rel (0) target = $region13
  $region12: #{multiscale_conv2d.1} parent=0 // pred_region
    _
  $region13: #{multiscale_conv2d.1} parent=0 // pred_fallthru
    _
  %v15 = vld [vmem:[%s1] sm:$0xf]
  %v16 = vld [vmem:[%s2] sm:$0xff]
  %v17 = vld [vmem:[%s0] sm:$0xff]
  %v18 = vld [vmem:[%s0 + $0x8] sm:$0xff]
  %v19 = vld [vmem:[%s0 + $0x10] sm:$0xff]
  %v20 = vld [vmem:[%s0 + $0x18] sm:$0xff]
  %v21 = vld [vmem:[%s0 + $0x20] sm:$0xff]
  %v22 = vld [vmem:[%s0 + $0x28] sm:$0xff]
  %v23 = vld [vmem:[%s0 + $0x30] sm:$0xff]
  %v24 = vld [vmem:[%s0 + $0x38] sm:$0xff]
  %v25 = vld [vmem:[%s0 + $0x40] sm:$0xff]
  %27 = vset.pattern.permute.xlu0 0
  %28 = vperm.xlu0 %27, %v16
  %v29 = vpop.permute.xlu0 %28
  %v40 = vunpack.c.l.b16 %v17
  %v41 = vunpack.c.h.b16 %v17
  %v42 = vunpack.c.l.b16 %v18
  %v43 = vunpack.c.h.b16 %v18
  %v44 = vunpack.c.l.b16 %v19
  %v45 = vunpack.c.h.b16 %v19
  %v46 = vunpack.c.l.b16 %v20
  %v47 = vunpack.c.h.b16 %v20
  %v48 = vunpack.c.l.b16 %v21
  %v49 = vunpack.c.h.b16 %v21
  %v50 = vunpack.c.l.b16 %v22
  %v51 = vunpack.c.h.b16 %v22
  %v52 = vunpack.c.l.b16 %v23
  %v53 = vunpack.c.h.b16 %v23
  %v54 = vunpack.c.l.b16 %v24
  %v55 = vunpack.c.h.b16 %v24
  %v56 = vunpack.c.l.b16 %v25
  %v57 = vunpack.c.h.b16 %v25
  %v58 = vpack.c.b16 %v42, %v40
  %v59 = vpack.c.b16 %v43, %v41
  %v60 = vpack.c.b16 %v46, %v44
  %v61 = vpack.c.b16 %v47, %v45
  %v62 = vpack.c.b16 %v50, %v48
  %v63 = vpack.c.b16 %v51, %v49
  %v64 = vpack.c.b16 %v54, %v52
  %v65 = vpack.c.b16 %v55, %v53
  %v66 = vpack.c.b16 %v56, %v56
  %v67 = vpack.c.b16 %v57, %v57
  %vm76 = vcmask 588800
  %v78 = vsel %vm76, %v15, 0
  %vm80 = vcmask 1043456
  %v82 = vsel %vm80, %v66, 0
  %v85 = vsel %vm80, %v67, 0
  %87 = vmatprep.subr.bf16.mxu0 %v59
  %88 = vmatpush1.bf16.msra.mxu0 %v58
  %89 = vmatprep.subr.bf16.mxu0 %v61
  %90 = vmatpush1.bf16.msra.mxu0 %v60
  %91 = vmatprep.subr.bf16.mxu0 %v63
  %92 = vmatpush1.bf16.msra.mxu0 %v62
  %93 = vmatprep.subr.bf16.mxu0 %v65
  %94 = vmatpush1.bf16.msra.mxu0 %v64
  %95 = vmatprep.subr.bf16.mxu0 %v85
  %96 = vmatpush1.bf16.msra.mxu0 %v82
  %97 = vmatprep.subr.bf16.mxu0 0
  %98 = vmatpush1.bf16.msra.mxu0 0
  %99 = vmatprep.subr.bf16.mxu0 0
  %100 = vmatpush1.bf16.msra.mxu0 0
  %101 = vmatprep.subr.bf16.mxu0 0
  %102 = vmatpush1.bf16.msra.mxu0 0
  %103 = vmatprep.subr.bf16.mxu0 0
  %104 = vmatpush1.bf16.msra.mxu0 0
  %105 = vmatprep.subr.bf16.mxu0 0
  %106 = vmatpush1.bf16.msra.mxu0 0
  %107 = vmatprep.subr.bf16.mxu0 0
  %108 = vmatpush1.bf16.msra.mxu0 0
  %109 = vmatprep.subr.bf16.mxu0 0
  %110 = vmatpush1.bf16.msra.mxu0 0
  %111 = vmatprep.subr.bf16.mxu0 0
  %112 = vmatpush1.bf16.msra.mxu0 0
  %113 = vmatprep.subr.bf16.mxu0 0
  %114 = vmatpush1.bf16.msra.mxu0 0
  %115 = vmatprep.subr.bf16.mxu0 0
  %116 = vmatpush1.bf16.msra.mxu0 0
  %117 = vmatprep.subr.bf16.mxu0 0
  %118 = vmatpush1.bf16.msra.mxu0 0
  %119 = vmatprep.mubr.bf16.mxu0 0
  %120 = vmatmul.mubr.bf16.gmra.mrb[0].mxu0 %v78
  %v121 = vpop.f32.mrb[0].mxu0
  %v122 = vadd.f32 %v29, %v121
  %v123 = vpop.f32.mrb[0].mxu0
  %v124 = vadd.f32 %v29, %v123
  %v125 = vpop.f32.mrb[0].mxu0
  %v126 = vpop.f32.mrb[0].mxu0
  %127 = vdwg.mxu0
  %128 = vst [vmem:[%s3] sm:$0xff] %v122
  %129 = vst [vmem:[%s3 + $0x8] sm:$0xff] %v124
  %s130 = scalar_lea.vmem %s0, 72
  %v131 = vld [vmem:[%s130] sm:$0xff]
  %v132 = vld [vmem:[%s130 + $0x8] sm:$0xff]
  %v133 = vld [vmem:[%s130 + $0x10] sm:$0xff]
  %v134 = vld [vmem:[%s130 + $0x18] sm:$0xff]
  %v135 = vld [vmem:[%s130 + $0x20] sm:$0xff]
  %v136 = vld [vmem:[%s130 + $0x28] sm:$0xff]
  %v137 = vld [vmem:[%s130 + $0x30] sm:$0xff]
  %v138 = vld [vmem:[%s130 + $0x38] sm:$0xff]
  %v139 = vld [vmem:[%s130 + $0x40] sm:$0xff]
  %v149 = vunpack.c.l.b16 %v131
  %v150 = vunpack.c.h.b16 %v131
  %v151 = vunpack.c.l.b16 %v132
  %v152 = vunpack.c.h.b16 %v132
  %v153 = vunpack.c.l.b16 %v133
  %v154 = vunpack.c.h.b16 %v133
  %v155 = vunpack.c.l.b16 %v134
  %v156 = vunpack.c.h.b16 %v134
  %v157 = vunpack.c.l.b16 %v135
  %v158 = vunpack.c.h.b16 %v135
  %v159 = vunpack.c.l.b16 %v136
  %v160 = vunpack.c.h.b16 %v136
  %v161 = vunpack.c.l.b16 %v137
  %v162 = vunpack.c.h.b16 %v137
  %v163 = vunpack.c.l.b16 %v138
  %v164 = vunpack.c.h.b16 %v138
  %v165 = vunpack.c.l.b16 %v139
  %v166 = vunpack.c.h.b16 %v139
  %v167 = vpack.c.b16 %v151, %v149
  %v168 = vpack.c.b16 %v152, %v150
  %v169 = vpack.c.b16 %v155, %v153
  %v170 = vpack.c.b16 %v156, %v154
  %v171 = vpack.c.b16 %v159, %v157
  %v172 = vpack.c.b16 %v160, %v158
  %v173 = vpack.c.b16 %v163, %v161
  %v174 = vpack.c.b16 %v164, %v162
  %v175 = vpack.c.b16 %v165, %v165
  %v176 = vpack.c.b16 %v166, %v166
  %v186 = vsel %vm80, %v175, 0
  %v189 = vsel %vm80, %v176, 0
  %191 = vmatprep.subr.bf16.mxu0 %v168
  %192 = vmatpush1.bf16.msra.mxu0 %v167
  %193 = vmatprep.subr.bf16.mxu0 %v170
  %194 = vmatpush1.bf16.msra.mxu0 %v169
  %195 = vmatprep.subr.bf16.mxu0 %v172
  %196 = vmatpush1.bf16.msra.mxu0 %v171
  %197 = vmatprep.subr.bf16.mxu0 %v174
  %198 = vmatpush1.bf16.msra.mxu0 %v173
  %199 = vmatprep.subr.bf16.mxu0 %v189
  %200 = vmatpush1.bf16.msra.mxu0 %v186
  %201 = vmatprep.subr.bf16.mxu0 0
  %202 = vmatpush1.bf16.msra.mxu0 0
  %203 = vmatprep.subr.bf16.mxu0 0
  %204 = vmatpush1.bf16.msra.mxu0 0
  %205 = vmatprep.subr.bf16.mxu0 0
  %206 = vmatpush1.bf16.msra.mxu0 0
  %207 = vmatprep.subr.bf16.mxu0 0
  %208 = vmatpush1.bf16.msra.mxu0 0
  %209 = vmatprep.subr.bf16.mxu0 0
  %210 = vmatpush1.bf16.msra.mxu0 0
  %211 = vmatprep.subr.bf16.mxu0 0
  %212 = vmatpush1.bf16.msra.mxu0 0
  %213 = vmatprep.subr.bf16.mxu0 0
  %214 = vmatpush1.bf16.msra.mxu0 0
  %215 = vmatprep.subr.bf16.mxu0 0
  %216 = vmatpush1.bf16.msra.mxu0 0
  %217 = vmatprep.subr.bf16.mxu0 0
  %218 = vmatpush1.bf16.msra.mxu0 0
  %219 = vmatprep.subr.bf16.mxu0 0
  %220 = vmatpush1.bf16.msra.mxu0 0
  %221 = vmatprep.subr.bf16.mxu0 0
  %222 = vmatpush1.bf16.msra.mxu0 0
  %223 = vmatprep.mubr.bf16.mxu0 0
  %224 = vmatmul.mubr.bf16.gmra.mrb[0].mxu0 %v78
  %v225 = vpop.f32.mrb[0].mxu0
  %v226 = vadd.f32 %v29, %v225
  %v227 = vpop.f32.mrb[0].mxu0
  %v228 = vadd.f32 %v29, %v227
  %v229 = vpop.f32.mrb[0].mxu0
  %v230 = vpop.f32.mrb[0].mxu0
  %231 = vdwg.mxu0
  %s232 = scalar_lea.vmem %s3, 16
  %233 = vst [vmem:[%s232] sm:$0xff] %v226
  %234 = vst [vmem:[%s232 + $0x8] sm:$0xff] %v228
  // Predicated region
  $region14: #{multiscale_conv2d.1} parent=0 // pred_check
    _
  $region15: #{multiscale_conv2d.1} parent=0 // pred_check_branch
    %236 = sbr.rel (0) target = $region17
  $region16: #{multiscale_conv2d.1} parent=0 // pred_region
    _
  $region17: #{multiscale_conv2d.1} parent=0 // pred_fallthru
    _
  // Predicated region
  $region18: #{multiscale_conv2d.1} parent=0 // pred_check
    _
  $region19: #{multiscale_conv2d.1} parent=0 // pred_check_branch
    %238 = sbr.rel (0) target = $region21
  $region20: #{multiscale_conv2d.1} parent=0 // pred_region
    _
  $region21: #{multiscale_conv2d.1} parent=0 // pred_fallthru
    _

</llo_original>
